<compile_context>
chip_gen: v7x
topology: tpu7x:2x2x1
jax: 0.10.0
libtpu: 0.0.40
codegen_flags: <defaults>
</compile_context>

<pallas_src>
from dataclasses import dataclass

import jax
import jax.numpy as jnp
from jax.experimental import pallas as pl
from jax.experimental.pallas import tpu as pltpu


# ---------------------------------------------------------------------------
# Sensor / intrinsic glue (plain Python / JAX, mirrors Pinhole.intrinsic())
# ---------------------------------------------------------------------------
@dataclass(frozen=True)
class Sensor:
    pixel_num: tuple   # (H, W)
    pixel_size: tuple  # (pixel_h, pixel_w)

    @property
    def h(self) -> float:
        return self.pixel_num[0] * self.pixel_size[0]

    @property
    def w(self) -> float:
        return self.pixel_num[1] * self.pixel_size[1]


def intrinsic_matrix(focal_length: float, sensor: Sensor) -> jnp.ndarray:
    """Matches Pinhole.intrinsic(): fx, fy, 1, cx, cy filled into a zero (3, 3)."""
    return jnp.array(
        [
            [focal_length / sensor.pixel_size[1], 0.0, sensor.w / 2.0],
            [0.0, focal_length / sensor.pixel_size[0], sensor.h / 2.0],
            [0.0, 0.0, 1.0],
        ],
        dtype=jnp.float32,
    )


# ---------------------------------------------------------------------------
# Pallas kernel
# ---------------------------------------------------------------------------
def _pinhole_kernel(img_hbm_ref, si_ref, intr_ref, img_out_ref, ok_ref):
    # Image: input 0 is aliased to output 0 (both raw HBM refs).  The forward is an
    # identity pass-through, so no data movement is needed and the refs stay unused.
    del img_hbm_ref, img_out_ref

    si = si_ref[...]        # (B, 9) float32 -- flattened (B, 3, 3) scene intrinsic
    intr = intr_ref[...]    # (1, 9) float32 -- flattened pinhole intrinsic

    # torch.allclose(si, intrinsic.broadcast_to(B, 3, 3)) with default tolerances.
    tol = 1e-8 + 1e-5 * jnp.abs(intr)
    ok = jnp.all(jnp.abs(si - intr) <= tol)
    ok_ref[0] = ok.astype(jnp.int32)


def pinhole_forward(image: jnp.ndarray,
                    scene_intrinsic,
                    focal_length: float,
                    sensor: Sensor) -> jnp.ndarray:
    """Pallas equivalent of Pinhole.forward on an ImageScene.

    image:           (N, C, H, W) float32
    scene_intrinsic: (N, 3, 3) float32 or None (None -> no intrinsic check)
    """
    n, c, h, w = image.shape
    if (h, w) != tuple(sensor.pixel_num):
        raise RuntimeError(
            f'Got ImageScene with shape {h}x{w}, but size of sensor is '
            f'{sensor.pixel_num[0]}x{sensor.pixel_num[1]}')

    intr_flat = intrinsic_matrix(focal_length, sensor).reshape(1, 9)

    has_intrinsic = scene_intrinsic is not None
    if has_intrinsic:
        si_flat = scene_intrinsic.astype(jnp.float32).reshape(-1, 9)
    else:
        # No intrinsic supplied: feed a trivially-matching dummy; the check result
        # is never fetched on this path, so the call is a pure alias / no-op.
        si_flat = intr_flat

    out_img, ok = pl.pallas_call(
        _pinhole_kernel,
        in_specs=[
            pl.BlockSpec(memory_space=pl.ANY),                    # image (stays in HBM)
            pl.BlockSpec(memory_space=pltpu.MemorySpace.VMEM),    # (B, 9) scene intrinsic
            pl.BlockSpec(memory_space=pltpu.MemorySpace.VMEM),    # (1, 9) pinhole intrinsic
        ],
        out_specs=(
            pl.BlockSpec(memory_space=pl.ANY),                    # image out (aliased)
            pl.BlockSpec(memory_space=pltpu.MemorySpace.SMEM),    # (1,) ok flag
        ),
        out_shape=(
            jax.ShapeDtypeStruct(image.shape, image.dtype),
            jax.ShapeDtypeStruct((1,), jnp.int32),
        ),
        input_output_aliases={0: 0},   # image in -> image out: zero-copy pass-through
    )(image, si_flat, intr_flat)

    # Host-side equivalent of `raise NotImplementedError()` on intrinsic mismatch.
    # Only the tiny int32 flag is fetched; the image tensor never moves.
    if has_intrinsic and int(jax.device_get(ok)[0]) != 1:
        raise NotImplementedError(
            'scene intrinsic does not match pinhole intrinsic')

    return out_img


# ---------------------------------------------------------------------------
# Demo / self-test
# ---------------------------------------------------------------------------
if __name__ == "__main__":
    key = jax.random.PRNGKey(0)

    # Deterministic "module parameters": focal length + sensor geometry.
    sensor = Sensor(pixel_num=(16, 16), pixel_size=(0.01, 0.01))
    focal_length = 0.035  # 35 mm

    n, c, h, w = 2, 4, 16, 16
    image = jax.random.normal(key, (n, c, h, w), dtype=jnp.float32)

    # Scene intrinsic consistent with the pinhole model (forward succeeds).
    intr = intrinsic_matrix(focal_length, sensor)
    scene_intrinsic = jnp.broadcast_to(intr, (n, 3, 3))

    out = pinhole_forward(image, scene_intrinsic, focal_length, sensor)
    out = jax.block_until_ready(out)
    assert out.shape == image.shape and out.dtype == image.dtype
    assert bool(jnp.allclose(out, image)), "forward must return the scene image unchanged"

    # Scene without an intrinsic: pure pass-through, no check, no host sync on a flag.
    out2 = jax.block_until_ready(pinhole_forward(image, None, focal_length, sensor))
    assert bool(jnp.allclose(out2, image))

    # Mismatched intrinsic must raise NotImplementedError (same as the torch module).
    bad_intrinsic = scene_intrinsic.at[:, 0, 0].multiply(1.5)
    raised = False
    try:
        pinhole_forward(image, bad_intrinsic, focal_length, sensor)
    except NotImplementedError:
        raised = True
    assert raised, "mismatched scene intrinsic must raise NotImplementedError"

    print("KERNEL_OK")
</pallas_src>

<mosaic_0001>
module attributes {stable_mosaic.version = 11 : i64} {
  func.func @_pinhole_kernel(%arg0: memref<2x4x16x16xf32, #tpu.memory_space<any>>, %arg1: memref<2x9xf32, #tpu.memory_space<vmem>>, %arg2: memref<1x9xf32, #tpu.memory_space<vmem>>, %arg3: memref<2x4x16x16xf32, #tpu.memory_space<any>>, %arg4: memref<1xi32, #tpu.memory_space<smem>>) attributes {dimension_semantics = [], scalar_prefetch = 0 : i64, scratch_operands = 0 : i64, tpu.core_type = #tpu.core_type<tc>} {
    %c0 = arith.constant 0 : index
    %c0_0 = arith.constant 0 : index
    %0 = vector.load %arg1[%c0, %c0_0] : memref<2x9xf32, #tpu.memory_space<vmem>>, vector<2x9xf32>
    %c0_1 = arith.constant 0 : index
    %c0_2 = arith.constant 0 : index
    %1 = vector.load %arg2[%c0_1, %c0_2] : memref<1x9xf32, #tpu.memory_space<vmem>>, vector<1x9xf32>
    %2 = math.absf %1 : vector<1x9xf32>
    %cst = arith.constant 9.99999974E-6 : f32
    %3 = vector.broadcast %cst : f32 to vector<1x9xf32>
    %4 = arith.mulf %3, %2 : vector<1x9xf32>
    %cst_3 = arith.constant 9.99999993E-9 : f32
    %5 = vector.broadcast %cst_3 : f32 to vector<1x9xf32>
    %6 = arith.addf %5, %4 : vector<1x9xf32>
    %7 = vector.broadcast %1 : vector<1x9xf32> to vector<2x9xf32>
    %8 = arith.subf %0, %7 : vector<2x9xf32>
    %9 = math.absf %8 : vector<2x9xf32>
    %10 = vector.broadcast %6 : vector<1x9xf32> to vector<2x9xf32>
    %11 = arith.cmpf ole, %9, %10 : vector<2x9xf32>
    %cst_4 = arith.constant 1.000000e+00 : f32
    %cst_5 = arith.constant 0.000000e+00 : f32
    %12 = vector.broadcast %cst_4 : f32 to vector<2x9xf32>
    %13 = vector.broadcast %cst_5 : f32 to vector<2x9xf32>
    %14 = arith.select %11, %12, %13 : vector<2x9xi1>, vector<2x9xf32>
    %15 = vector.shape_cast %14 : vector<2x9xf32> to vector<1x2x9xf32>
    %cst_6 = arith.constant dense<0x7F800000> : vector<1xf32>
    %16 = vector.multi_reduction <minimumf>, %15, %cst_6 [1, 2] : vector<1x2x9xf32> to vector<1xf32>
    %17 = vector.shape_cast %16 : vector<1xf32> to vector<1x1x1xf32>
    %18 = vector.extract %17[0, 0, 0] : f32 from vector<1x1x1xf32>
    %cst_7 = arith.constant 0.000000e+00 : f32
    %19 = arith.cmpf ogt, %18, %cst_7 : f32
    %20 = arith.extui %19 : i1 to i32
    %c0_8 = arith.constant 0 : index
    %21 = memref.load %arg4[%c0_8] : memref<1xi32, #tpu.memory_space<smem>>
    memref.store %20, %arg4[%c0_8] : memref<1xi32, #tpu.memory_space<smem>>
    return
  }
}

</mosaic_0001>

<llo_original>
// kernel: tpu_custom_call.1
$region0: #{tpu_custom_call.1}
  #allocation0 [shape = 'u32[]', space=smem, size = 0x4, offset = 0x4, fixed_abs, tag = 'smem constant byte address 0x4 - core index']
  #allocation1 [shape = 'u32[144,128]{1,0:T(1,128)}', space=vmem, size = 0x12000, scoped, tag = 'internal scratch']
  %s0 = inlined_call_operand.hbm [shape: f32[2,4,16,16], index: 0, kind: input, shape index: {}, may-alias: {0,3}]
  %s1 = inlined_call_operand.vmem [shape: f32[2,9], index: 1, kind: input, shape index: {}]
  %s2 = inlined_call_operand.vmem [shape: f32[1,9], index: 2, kind: input, shape index: {}]
  %s3 = inlined_call_operand.hbm [shape: f32[2,4,16,16], index: 3, kind: output, shape index: {0}, may-alias: {0,3}]
  %s4 = inlined_call_operand.hbm [shape: s32[1], index: 4, kind: output, shape index: {1}]
  %5 = xla_tuple %s3, %s4
  %s6 = sld [smem:[#allocation0]]
  $region18: #{tpu_custom_call.1} parent=0
    _
  %s8 = ssub.s32 1, %s6
  %s9 = scalar_select 0, %s8, %s6
  $region1: #{tpu_custom_call.1} parent=0
    #allocation2 [shape = 'u8[512]{0}', space=smem, size = 0x200, scoped, tag = 'output window, operand 1, single buffered']
    #allocation3 [shape = 's32[1]{0}', space=sflag, size = 0x4, scoped, tag = 'scoped memory for tpu_custom_call.1']
    %10 = vsyncpa [#allocation3], 0
    // Predicated region
    $region2: #{tpu_custom_call.1} parent=1 // pred_check
      _
    $region3: #{tpu_custom_call.1} parent=1 // pred_check_branch
      %12 = sbr.rel (0) target = $region5
    $region4: #{tpu_custom_call.1} parent=1 // pred_region
      _
    $region5: #{tpu_custom_call.1} parent=1 // pred_fallthru
      _
    // Predicated region
    $region6: #{tpu_custom_call.1} parent=1 // pred_check
      _
    $region7: #{tpu_custom_call.1} parent=1 // pred_check_branch
      %14 = sbr.rel (0) target = $region9
    $region8: #{tpu_custom_call.1} parent=1 // pred_region
      _
    $region9: #{tpu_custom_call.1} parent=1 // pred_fallthru
      _
    %v15 = vld [vmem:[%s1] sm:$0x3]
    %v16 = vld [vmem:[%s2] sm:$0x1]
    %v17 = vand.u32 2147483647, %v16
    %v18 = vmul.f32 %v17, 1e-05
    %v19 = vadd.f32 %v18, 1e-08
    %v21 = vlaneseq
    %v22 = vshrl.u32 %v21, 7
    %v23 = vsub.s32 0, %v22
    %v24 = vrot.slane %v16, %v23
    %v26 = vsub.f32 %v15, %v24
    %v27 = vand.u32 2147483647, %v26
    %v29 = vlaneseq
    %v30 = vshrl.u32 %v29, 7
    %v31 = vsub.s32 0, %v30
    %v32 = vrot.slane %v19, %v31
    %vm34 = vcmp.le.f32.partialorder %v27, %v32
    %v35 = vsel %vm34, 1.0, 0.0
    %vm36 = vcmask 66560
    %v37 = vsel %vm36, %v35, inf
    %38 = vmin.xlane.f32.xlu0 %v37
    %v39 = vpop.xlane.xlu0 %38
    %v40 = vrot.slane %v39, 4
    %v41 = vmin.f32 %v39, %v40
    %v42 = vrot.slane %v41, 2
    %v43 = vmin.f32 %v41, %v42
    %v44 = vrot.slane %v43, 1
    %v45 = vmin.f32 %v43, %v44
    %s46 = vtos %v45
    %p47 = scmp.gt.f32.partialorder %s46, 0.0
    %s48 = scalar_select %p47, 1, 0
    %s49 = scalar_lea.smem [#allocation2], 0
    %50 = sst [smem:[%s49]] %s48
    // Predicated region
    $region10: #{tpu_custom_call.1} parent=1 // pred_check
      _
    $region11: #{tpu_custom_call.1} parent=1 // pred_check_branch
      %52 = sbr.rel (0) target = $region13
    $region12: #{tpu_custom_call.1} parent=1 // pred_region
      %s54 = ssub.s32 16, 16
      %55 = vsyncadd [#allocation3], %s54
      %58 = dma.smem_to_hbm [#allocation2], 16, %s4, [#allocation3]
    $region13: #{tpu_custom_call.1} parent=1 // pred_fallthru
      _
    // Predicated region
    $region14: #{tpu_custom_call.1} parent=1 // pred_check
      _
    $region15: #{tpu_custom_call.1} parent=1 // pred_check_branch
      %60 = sbr.rel (0) target = $region17
    $region16: #{tpu_custom_call.1} parent=1 // pred_region
      %61 = dma.done [#allocation3], 16
    $region17: #{tpu_custom_call.1} parent=1 // pred_fallthru
      _
    %62 = sfence
    %63 = vsyncpa [#allocation3], 1

</llo_original>
